<compile_context>
chip_gen: v7x
topology: tpu7x:2x2x1
jax: 0.10.0
libtpu: 0.0.40
codegen_flags: <defaults>
</compile_context>

<pallas_src>
import functools

import jax
import jax.numpy as jnp
from jax.experimental import pallas as pl
from jax.experimental.pallas import tpu as pltpu


_MIB = 1024 * 1024


def _device_kind():
    try:
        return jax.devices()[0].device_kind.lower()
    except Exception:
        return ""


def _is_v7x_like(kind):
    return any(tag in kind for tag in ("v7", "tpu7", "7x"))


def _vmem_capacity_bytes():
    """Physical VMEM per TensorCore; defensive fallbacks if query is unavailable."""
    try:
        info = pltpu.get_tpu_info()
        v = getattr(info, "vmem_capacity_bytes", None)
        if v:
            return int(v)
    except Exception:
        pass
    return 64 * _MIB if _is_v7x_like(_device_kind()) else 128 * _MIB


def _num_tensorcores():
    """2-way grid split only pays on chips with 2 TensorCores (v7x)."""
    return 2 if _is_v7x_like(_device_kind()) else 1


def _choose_tile(batch, feat, itemsize, input_budget):
    """Largest batch tile whose 3-input, double-buffered footprint fits the budget."""
    # Sublane packing granularity: 8 (4-byte), 16 (2-byte), 32 (1-byte).
    gran = max(8, 32 // int(itemsize))
    per_row = 3 * 2 * feat * itemsize          # 3 inputs x 2 pipeline buffers
    tb = input_budget // per_row
    if tb >= batch:
        return int(batch)                      # one block == full array dim (always legal)
    tb = max(gran, (tb // gran) * gran)
    # TODO(synk): if feat is so large that even tb==gran overflows the budget, the
    # footprint is bounded only by vmem_limit_bytes (extreme edge case).
    return int(min(tb, batch))


def _triplet_kernel(a_ref, p_ref, n_ref, o_ref, *, margin, eps, batch, tb, feat,
                    nblk_per_core, mask_rows):
    blk = pl.program_id(1)

    a = a_ref[...]
    # Subtract in the input dtype (matches the module), upcast the halved diff
    # stream to f32 before the eps shift / square.
    d_ap = (a - p_ref[...]).astype(jnp.float32) + eps
    d_an = (a - n_ref[...]).astype(jnp.float32) + eps

    # Fused single reduction: sum(d_ap^2 - d_an^2) == dp - dn.
    fused = d_ap * d_ap - d_an * d_an                        # (tb, feat)

    if feat % 128 == 0 and feat > 128:
        # Fold the feat/128 lane tiles with VALU adds first (lane-aligned,
        # zero-cost static slices), then issue a single cross-lane (XLU)
        # reduce per row group.  Keeps XLU slot pressure minimal on v7x.
        acc = fused[:, 0:128]
        for t in range(1, feat // 128):
            acc = acc + fused[:, t * 128:(t + 1) * 128]
        row = jnp.sum(acc, axis=-1, keepdims=True)           # (tb, 1)
    else:
        # TODO(synk): for small D (< 128) we knowingly accept the lane waste
        # instead of packing multiple rows per lane row.
        row = jnp.sum(fused, axis=-1, keepdims=True)         # (tb, 1)

    losses = jnp.maximum(row + margin, 0.0)                  # ReLU

    if mask_rows:
        # Only reached when batch % tb != 0: mask rows past the true batch in
        # the (single) partial edge block.
        global_blk = pl.program_id(0) * nblk_per_core + blk
        row_ids = global_blk * tb + jax.lax.broadcasted_iota(jnp.int32, (tb, 1), 0)
        losses = jnp.where(row_ids < batch, losses, 0.0)

    block_sum = jnp.sum(losses)

    @pl.when(blk == 0)
    def _():
        o_ref[0, 0] = 0.0

    o_ref[0, 0] += block_sum


def triplet_loss(anchor, positive, negative, margin: float = 1.0, eps: float = 1e-6,
                 _tile_rows: int | None = None):
    """Scalar triplet loss for (B, D) anchor / positive / negative features."""
    assert anchor.shape == positive.shape == negative.shape
    assert anchor.ndim == 2
    batch, feat = anchor.shape
    itemsize = jnp.dtype(anchor.dtype).itemsize

    vmem_total = _vmem_capacity_bytes()
    # Double-buffered input budget: ~1/3 of physical VMEM, capped at 40 MiB
    # (=> ~21 MiB on v7x's 64 MiB/TC, 40 MiB on v5e/v6e's 128 MiB).
    input_budget = max(12 * _MIB, min(40 * _MIB, vmem_total // 3))

    tb = _tile_rows if _tile_rows is not None else _choose_tile(
        batch, feat, itemsize, input_budget)
    nblocks = -(-batch // tb)

    ncores = _num_tensorcores()
    if nblocks < 2 or nblocks % ncores != 0:
        # Fall back to a single core-slot rather than ever issuing a clamped,
        # fully-masked (wasted) tile DMA.
        ncores = 1
    nblk_per_core = nblocks // ncores

    # Scoped-VMEM limit from the actual footprint: double-buffered inputs plus
    # a generous estimate of the f32 intermediates, capped below physical VMEM.
    in_bytes = 3 * 2 * tb * feat * itemsize
    scratch_bytes = 4 * tb * feat * 4
    vmem_limit = int(max(16 * _MIB,
                         min(vmem_total - 16 * _MIB,
                             in_bytes + scratch_bytes + 4 * _MIB)))

    def in_map(c, b):
        return (c * nblk_per_core + b, 0)

    in_spec = pl.BlockSpec((tb, feat), in_map)
    out_spec = pl.BlockSpec((1, 1), lambda c, b: (c, 0),
                            memory_space=pltpu.MemorySpace.SMEM)

    kernel = functools.partial(
        _triplet_kernel, margin=float(margin), eps=float(eps), batch=batch,
        tb=tb, feat=feat, nblk_per_core=nblk_per_core,
        mask_rows=(batch % tb != 0))

    cost = pl.CostEstimate(
        flops=8 * batch * feat,
        transcendentals=0,
        bytes_accessed=3 * batch * feat * itemsize + 4 * ncores,
    )

    partial_sums = pl.pallas_call(
        kernel,
        out_shape=jax.ShapeDtypeStruct((ncores, 1), jnp.float32),
        grid=(ncores, nblk_per_core),
        in_specs=[in_spec, in_spec, in_spec],
        out_specs=out_spec,
        compiler_params=pltpu.CompilerParams(
            # TODO(synk): on v7x confirm the leading axis really shards across
            # both TensorCores (Mosaic dump); switch it to pltpu.CORE_PARALLEL
            # if plain "parallel" does not.
            dimension_semantics=("parallel", "arbitrary"),
            vmem_limit_bytes=vmem_limit,
        ),
        cost_estimate=cost,
    )(anchor, positive, negative)

    return jnp.sum(partial_sums) / batch


def triplet_loss_ref(anchor, positive, negative, margin=1.0, eps=1e-6):
    """Pure-JAX reference matching the PyTorch forward."""
    d_ap = (anchor - positive).astype(jnp.float32) + eps
    d_an = (anchor - negative).astype(jnp.float32) + eps
    dp = jnp.sum(d_ap * d_ap, axis=-1)
    dn = jnp.sum(d_an * d_an, axis=-1)
    return jnp.mean(jnp.maximum(dp - dn + margin, 0.0))


if __name__ == "__main__":
    # Small shape consistent with the module's forward: (B, D) feature triplets.
    k_a, k_p, k_n = jax.random.split(jax.random.PRNGKey(0), 3)
    B, D = 8, 32
    anchor = jax.random.normal(k_a, (B, D), dtype=jnp.float32)
    positive = jax.random.normal(k_p, (B, D), dtype=jnp.float32)
    negative = jax.random.normal(k_n, (B, D), dtype=jnp.float32)

    loss = triplet_loss(anchor, positive, negative, margin=1.0, eps=1e-6)
    jax.block_until_ready(loss)
    ref = triplet_loss_ref(anchor, positive, negative, margin=1.0, eps=1e-6)
    assert jnp.allclose(loss, ref, atol=1e-5, rtol=1e-5), (loss, ref)

    # Exercise the multi-block / masked-partial-edge-block / lane-folding path
    # by forcing a small batch tile.
    k_a2, k_p2, k_n2 = jax.random.split(jax.random.PRNGKey(1), 3)
    B2, D2 = 200, 256
    a2 = jax.random.normal(k_a2, (B2, D2), dtype=jnp.float32)
    p2 = jax.random.normal(k_p2, (B2, D2), dtype=jnp.float32)
    n2 = jax.random.normal(k_n2, (B2, D2), dtype=jnp.float32)

    loss2 = triplet_loss(a2, p2, n2, margin=1.0, eps=1e-6, _tile_rows=48)
    jax.block_until_ready(loss2)
    ref2 = triplet_loss_ref(a2, p2, n2, margin=1.0, eps=1e-6)
    assert jnp.allclose(loss2, ref2, atol=1e-3, rtol=1e-3), (loss2, ref2)

    # Same shape through the default (single big tile) path.
    loss3 = triplet_loss(a2, p2, n2, margin=1.0, eps=1e-6)
    jax.block_until_ready(loss3)
    assert jnp.allclose(loss3, ref2, atol=1e-3, rtol=1e-3), (loss3, ref2)

    print("KERNEL_OK")
</pallas_src>

<mosaic_0001>
module attributes {stable_mosaic.version = 11 : i64} {
  func.func @_triplet_kernel(%arg0: i32, %arg1: i32, %arg2: memref<8x32xf32, #tpu.memory_space<vmem>>, %arg3: memref<8x32xf32, #tpu.memory_space<vmem>>, %arg4: memref<8x32xf32, #tpu.memory_space<vmem>>, %arg5: memref<1x1xf32, #tpu.memory_space<smem>>) attributes {dimension_semantics = [#tpu.dimension_semantics<parallel>, #tpu.dimension_semantics<arbitrary>], iteration_bounds = array<i64: 1, 1>, scalar_prefetch = 0 : i64, scratch_operands = 0 : i64, tpu.core_type = #tpu.core_type<tc>, window_params = [{transform_indices = @transform_0, window_bounds = array<i64: 8, 32>}, {transform_indices = @transform_1, window_bounds = array<i64: 8, 32>}, {transform_indices = @transform_2, window_bounds = array<i64: 8, 32>}, {transform_indices = @transform_3, window_bounds = array<i64: 1, 1>}]} {
    %c0 = arith.constant 0 : index
    %c0_0 = arith.constant 0 : index
    %0 = vector.load %arg2[%c0, %c0_0] : memref<8x32xf32, #tpu.memory_space<vmem>>, vector<8x32xf32>
    %c0_1 = arith.constant 0 : index
    %c0_2 = arith.constant 0 : index
    %1 = vector.load %arg3[%c0_1, %c0_2] : memref<8x32xf32, #tpu.memory_space<vmem>>, vector<8x32xf32>
    %2 = arith.subf %0, %1 : vector<8x32xf32>
    %cst = arith.constant 9.99999997E-7 : f32
    %3 = vector.broadcast %cst : f32 to vector<8x32xf32>
    %4 = arith.addf %2, %3 : vector<8x32xf32>
    %c0_3 = arith.constant 0 : index
    %c0_4 = arith.constant 0 : index
    %5 = vector.load %arg4[%c0_3, %c0_4] : memref<8x32xf32, #tpu.memory_space<vmem>>, vector<8x32xf32>
    %6 = arith.subf %0, %5 : vector<8x32xf32>
    %cst_5 = arith.constant 9.99999997E-7 : f32
    %7 = vector.broadcast %cst_5 : f32 to vector<8x32xf32>
    %8 = arith.addf %6, %7 : vector<8x32xf32>
    %9 = arith.mulf %4, %4 : vector<8x32xf32>
    %10 = arith.mulf %8, %8 : vector<8x32xf32>
    %11 = arith.subf %9, %10 : vector<8x32xf32>
    %cst_6 = arith.constant dense<0.000000e+00> : vector<8xf32>
    %12 = vector.multi_reduction <add>, %11, %cst_6 [1] : vector<8x32xf32> to vector<8xf32>
    %13 = vector.shape_cast %12 : vector<8xf32> to vector<8x1xf32>
    %cst_7 = arith.constant 1.000000e+00 : f32
    %14 = vector.broadcast %cst_7 : f32 to vector<8x1xf32>
    %15 = arith.addf %13, %14 : vector<8x1xf32>
    %cst_8 = arith.constant 0.000000e+00 : f32
    %16 = vector.broadcast %cst_8 : f32 to vector<8x1xf32>
    %17 = arith.maximumf %15, %16 : vector<8x1xf32>
    %18 = vector.shape_cast %17 : vector<8x1xf32> to vector<1x8x1xf32>
    %cst_9 = arith.constant dense<0.000000e+00> : vector<1xf32>
    %19 = vector.multi_reduction <add>, %18, %cst_9 [1, 2] : vector<1x8x1xf32> to vector<1xf32>
    %20 = vector.shape_cast %19 : vector<1xf32> to vector<1x1x1xf32>
    %21 = vector.extract %20[0, 0, 0] : f32 from vector<1x1x1xf32>
    %c0_i32 = arith.constant 0 : i32
    %22 = arith.cmpi eq, %arg1, %c0_i32 : i32
    %23 = arith.extui %22 : i1 to i32
    %c0_i32_10 = arith.constant 0 : i32
    %24 = arith.cmpi ne, %23, %c0_i32_10 : i32
    scf.if %24 {
      %cst_15 = arith.constant 0.000000e+00 : f32
      %c0_16 = arith.constant 0 : index
      %c0_17 = arith.constant 0 : index
      %28 = memref.load %arg5[%c0_16, %c0_17] : memref<1x1xf32, #tpu.memory_space<smem>>
      memref.store %cst_15, %arg5[%c0_16, %c0_17] : memref<1x1xf32, #tpu.memory_space<smem>>
    } else {
    }
    %c0_11 = arith.constant 0 : index
    %c0_12 = arith.constant 0 : index
    %25 = memref.load %arg5[%c0_11, %c0_12] : memref<1x1xf32, #tpu.memory_space<smem>>
    %26 = arith.addf %25, %21 : f32
    %c0_13 = arith.constant 0 : index
    %c0_14 = arith.constant 0 : index
    %27 = memref.load %arg5[%c0_13, %c0_14] : memref<1x1xf32, #tpu.memory_space<smem>>
    memref.store %26, %arg5[%c0_13, %c0_14] : memref<1x1xf32, #tpu.memory_space<smem>>
    return
  }
  func.func @transform_0(%arg0: i32, %arg1: i32) -> (i32, i32) {
    %c1_i32 = arith.constant 1 : i32
    %0 = arith.muli %arg0, %c1_i32 : i32
    %1 = arith.addi %0, %arg1 : i32
    %c0_i32 = arith.constant 0 : i32
    %c0_i32_0 = arith.constant 0 : i32
    return %1, %c0_i32 : i32, i32
  }
  func.func @transform_1(%arg0: i32, %arg1: i32) -> (i32, i32) {
    %c1_i32 = arith.constant 1 : i32
    %0 = arith.muli %arg0, %c1_i32 : i32
    %1 = arith.addi %0, %arg1 : i32
    %c0_i32 = arith.constant 0 : i32
    %c0_i32_0 = arith.constant 0 : i32
    return %1, %c0_i32 : i32, i32
  }
  func.func @transform_2(%arg0: i32, %arg1: i32) -> (i32, i32) {
    %c1_i32 = arith.constant 1 : i32
    %0 = arith.muli %arg0, %c1_i32 : i32
    %1 = arith.addi %0, %arg1 : i32
    %c0_i32 = arith.constant 0 : i32
    %c0_i32_0 = arith.constant 0 : i32
    return %1, %c0_i32 : i32, i32
  }
  func.func @transform_3(%arg0: i32, %arg1: i32) -> (i32, i32) {
    %c0_i32 = arith.constant 0 : i32
    %c0_i32_0 = arith.constant 0 : i32
    return %arg0, %c0_i32 : i32, i32
  }
}

</mosaic_0001>

<llo_original>
// kernel: tpu_custom_call.1
$region0: #{tpu_custom_call.1}
  #allocation0 [shape = 'u32[]', space=smem, size = 0x4, offset = 0x4, fixed_abs, tag = 'smem constant byte address 0x4 - core index']
  #allocation1 [shape = 'u32[144,128]{1,0:T(1,128)}', space=vmem, size = 0x12000, scoped, tag = 'internal scratch']
  %s0 = inlined_call_operand.hbm [shape: f32[8,32], index: 0, kind: input, shape index: {}]
  %s1 = inlined_call_operand.hbm [shape: f32[8,32], index: 1, kind: input, shape index: {}]
  %s2 = inlined_call_operand.hbm [shape: f32[8,32], index: 2, kind: input, shape index: {}]
  %s3 = inlined_call_operand.hbm [shape: f32[1,1], index: 3, kind: output, shape index: {}]
  %s4 = sld [smem:[#allocation0]]
  $region38: #{tpu_custom_call.1} parent=0
    _
  %s6 = ssub.s32 1, %s4
  %s7 = scalar_select 0, %s6, %s4
  $region1: #{tpu_custom_call.1} parent=0
    #allocation2 [shape = 'u8[4096]{0}', space=vmem, size = 0x1000, scoped, tag = 'input window, operand 0, single buffered']
    #allocation3 [shape = 's32[1]{0}', space=sflag, size = 0x4, scoped, tag = 'scoped memory for tpu_custom_call.1']
    #allocation4 [shape = 's32[1]{0}', space=sflag, size = 0x4, scoped, tag = 'scoped memory for tpu_custom_call.1']
    #allocation5 [shape = 'u8[4096]{0}', space=vmem, size = 0x1000, scoped, tag = 'input window, operand 1, single buffered']
    #allocation6 [shape = 's32[1]{0}', space=sflag, size = 0x4, scoped, tag = 'scoped memory for tpu_custom_call.1']
    #allocation7 [shape = 'u8[4096]{0}', space=vmem, size = 0x1000, scoped, tag = 'input window, operand 2, single buffered']
    #allocation8 [shape = 'u8[512]{0}', space=smem, size = 0x200, scoped, tag = 'output window, operand 0, single buffered']
    %8 = vsyncpa [#allocation3], 0
    %9 = vsyncpa [#allocation6], 0
    %10 = vsyncpa [#allocation4], 0
    // Predicated region
    $region2: #{tpu_custom_call.1} parent=1 // pred_check
      _
    $region3: #{tpu_custom_call.1} parent=1 // pred_check_branch
      %12 = sbr.rel (0) target = $region5
    $region4: #{tpu_custom_call.1} parent=1 // pred_region
      %s13 = sadd.s32 0, 0
      %s15 = ssub.s32 128, 128
      %16 = vsyncadd [#allocation3], %s15
      %s17 = smul.addr %s13, 128
      %s18 = scalar_lea.hbm %s0, %s17
      %s20 = sshll.u32 [#allocation2], 4
      %s21 = int_to_ptr.vmem [resolvable:$true] %s20
      %23 = dma.hbm_to_vmem [thread:$0]  %s18, 128, %s21, [#allocation3]
    $region5: #{tpu_custom_call.1} parent=1 // pred_fallthru
      _
    // Predicated region
    $region6: #{tpu_custom_call.1} parent=1 // pred_check
      _
    $region7: #{tpu_custom_call.1} parent=1 // pred_check_branch
      %25 = sbr.rel (0) target = $region9
    $region8: #{tpu_custom_call.1} parent=1 // pred_region
      %s26 = sadd.s32 0, 0
      %s28 = ssub.s32 128, 128
      %29 = vsyncadd [#allocation6], %s28
      %s30 = smul.addr %s26, 128
      %s31 = scalar_lea.hbm %s1, %s30
      %s33 = sshll.u32 [#allocation5], 4
      %s34 = int_to_ptr.vmem [resolvable:$true] %s33
      %36 = dma.hbm_to_vmem [thread:$0]  %s31, 128, %s34, [#allocation6]
    $region9: #{tpu_custom_call.1} parent=1 // pred_fallthru
      _
    // Predicated region
    $region10: #{tpu_custom_call.1} parent=1 // pred_check
      _
    $region11: #{tpu_custom_call.1} parent=1 // pred_check_branch
      %38 = sbr.rel (0) target = $region13
    $region12: #{tpu_custom_call.1} parent=1 // pred_region
      %s39 = sadd.s32 0, 0
      %s41 = ssub.s32 128, 128
      %42 = vsyncadd [#allocation6], %s41
      %s43 = smul.addr %s39, 128
      %s44 = scalar_lea.hbm %s2, %s43
      %s46 = sshll.u32 [#allocation7], 4
      %s47 = int_to_ptr.vmem [resolvable:$true] %s46
      %49 = dma.hbm_to_vmem [thread:$0]  %s44, 128, %s47, [#allocation6]
    $region13: #{tpu_custom_call.1} parent=1 // pred_fallthru
      _
    // Predicated region
    $region14: #{tpu_custom_call.1} parent=1 // pred_check
      _
    $region15: #{tpu_custom_call.1} parent=1 // pred_check_branch
      %51 = sbr.rel (0) target = $region17
    $region16: #{tpu_custom_call.1} parent=1 // pred_region
      %52 = dma.done [#allocation3], 128
    $region17: #{tpu_custom_call.1} parent=1 // pred_fallthru
      _
    // Predicated region
    $region18: #{tpu_custom_call.1} parent=1 // pred_check
      _
    $region19: #{tpu_custom_call.1} parent=1 // pred_check_branch
      %54 = sbr.rel (0) target = $region21
    $region20: #{tpu_custom_call.1} parent=1 // pred_region
      %55 = dma.done [#allocation6], 128
    $region21: #{tpu_custom_call.1} parent=1 // pred_fallthru
      _
    // Predicated region
    $region22: #{tpu_custom_call.1} parent=1 // pred_check
      _
    $region23: #{tpu_custom_call.1} parent=1 // pred_check_branch
      %57 = sbr.rel (0) target = $region25
    $region24: #{tpu_custom_call.1} parent=1 // pred_region
      %58 = dma.done [#allocation6], 128
    $region25: #{tpu_custom_call.1} parent=1 // pred_fallthru
      _
    %s59 = sadd.s32 0, 0
    %s60 = sadd.s32 0, 0
    %s61 = sadd.s32 0, 0
    %v62 = vld [vmem:[#allocation2] sm:$0xff]
    %v63 = vld [vmem:[#allocation5] sm:$0xff]
    %v64 = vsub.f32 %v62, %v63
    %v65 = vadd.f32 %v64, 1e-06
    %v66 = vld [vmem:[#allocation7] sm:$0xff]
    %v67 = vsub.f32 %v62, %v66
    %v68 = vadd.f32 %v67, 1e-06
    %v69 = vmul.f32 %v65, %v65
    %v70 = vmul.f32 %v68, %v68
    %v71 = vsub.f32 %v69, %v70
    %vm72 = vcmask 261120
    %v73 = vsel %vm72, %v71, 0.0
    %74 = vadd.xlane.f32.xlu0 %v73
    %v75 = vpop.xlane.xlu0 %74
    %v76 = vadd.f32 %v75, 1.0
    %v77 = vmax.f32 %v76, 0.0
    %vm78 = vcmask 7168
    %v79 = vsel %vm78, %v77, 0.0
    %80 = vadd.xlane.f32.xlu0 %v79
    %v81 = vpop.xlane.xlu0 %80
    %v82 = vrot.slane %v81, 4
    %v83 = vadd.f32 %v81, %v82
    %v84 = vrot.slane %v83, 2
    %v85 = vadd.f32 %v83, %v84
    %v86 = vrot.slane %v85, 1
    %v87 = vadd.f32 %v85, %v86
    %s88 = vtos %v87
    %p89 = scmp.eq.s32.totalorder 0, 0
    // Predicated region
    $region26: #{tpu_custom_call.1} parent=1 // pred_check
      %p90 = pneg %p89
    $region27: #{tpu_custom_call.1} parent=1 // pred_check_branch
      %92 = sbr.rel (%p90) target = $region29
    $region28: #{tpu_custom_call.1} parent=1 // pred_region
      %s93 = scalar_lea.smem [#allocation8], 0
      %94 = sst [smem:[%s93]] 0.0
    $region29: #{tpu_custom_call.1} parent=1 // pred_fallthru
      _
    %s95 = sld [smem:[#allocation8]]
    %s96 = sadd.f32 %s95, %s88
    %s97 = scalar_lea.smem [#allocation8], 0
    %98 = sst [smem:[%s97]] %s96
    // Predicated region
    $region30: #{tpu_custom_call.1} parent=1 // pred_check
      _
    $region31: #{tpu_custom_call.1} parent=1 // pred_check_branch
      %100 = sbr.rel (0) target = $region33
    $region32: #{tpu_custom_call.1} parent=1 // pred_region
      %s102 = ssub.s32 16, 16
      %103 = vsyncadd [#allocation4], %s102
      %106 = dma.smem_to_hbm [#allocation8], 16, %s3, [#allocation4]
    $region33: #{tpu_custom_call.1} parent=1 // pred_fallthru
      _
    // Predicated region
    $region34: #{tpu_custom_call.1} parent=1 // pred_check
      _
    $region35: #{tpu_custom_call.1} parent=1 // pred_check_branch
      %108 = sbr.rel (0) target = $region37
    $region36: #{tpu_custom_call.1} parent=1 // pred_region
      %109 = dma.done [#allocation4], 16
    $region37: #{tpu_custom_call.1} parent=1 // pred_fallthru
      _
    %110 = sfence
    %111 = vsyncpa [#allocation3], 1
    %112 = vsyncpa [#allocation6], 1
    %113 = vsyncpa [#allocation4], 1

</llo_original>
